<compile_context>
chip_gen: v5e
topology: v5e:2x2
jax: 0.10.0
libtpu: 0.0.40
codegen_flags: <defaults>
</compile_context>

<pallas_src>
import functools

import jax
import jax.numpy as jnp
from jax.experimental import pallas as pl
from jax.experimental.pallas import tpu as pltpu


def _minibatch_disc_kernel(x_ref, t_ref, seg_ref, o_ref, *, batch, mean):
    """One grid step handles a tile of `TO` out-features.

    x_ref:   [B, in_features]          (same block every step)
    t_ref:   [in_features, TO * kd]    (this tile's slice of T, flattened)
    seg_ref: [TO * kd, TO]             (block-diag ones: segmented kd-sum)
    o_ref:   [1, B, TO]                (this tile's columns of o_b)
    """
    B = batch
    to = o_ref.shape[-1]

    x = x_ref[...]
    t = t_ref[...]
    seg = seg_ref[...]

    # [B, TO*kd]; kd stays on lanes, B on sublanes -- the pairwise pass below
    # needs no relayout of this tensor.
    m = jnp.dot(x, t, preferred_element_type=jnp.float32)

    acc = jnp.zeros((B, to), dtype=jnp.float32)

    def pair_term(shift):
        rolled = pltpu.roll(m, shift=shift, axis=0)         # pairs j with j-shift
        diff = jnp.abs(m - rolled)                           # [B, TO*kd]
        # Segmented lane reduction (sum over each kd block) on the MXU via a
        # block-diagonal ones matrix -> [B, TO]; avoids a lane->sublane
        # relayout of `diff`.
        norm = jnp.dot(diff, seg, preferred_element_type=jnp.float32)
        return jnp.exp(-norm)                                # [B, TO]

    # Pairwise symmetry: shift s pairs row j with row (j - s) mod B, and the
    # mirrored shift (B - s) yields the same distances assigned to the partner
    # rows:  exp(-norm_{B-s}) == roll(exp(-norm_s), B - s, axis=0).
    # So only shifts 1 .. (B-1)//2 (plus the self-mirrored B/2 when B is even)
    # need the expensive work.
    # TODO(synk): switch this static unroll to lax.fori_loop for large B.
    for s in range(1, (B - 1) // 2 + 1):
        e = pair_term(s)
        acc = acc + e + pltpu.roll(e, shift=B - s, axis=0)

    if B % 2 == 0 and B >= 2:
        acc = acc + pair_term(B // 2)

    if mean and B > 1:
        acc = acc * (1.0 / float(B - 1))

    o_ref[0] = acc.astype(o_ref.dtype)


def _pick_out_tile(out_features, kernel_dims, max_lanes=4096):
    """Largest divisor tile of out_features whose lane width (tile*kd) keeps
    the per-step VMEM footprint modest and stays 128-lane aligned (unless the
    tile is the whole axis)."""
    if out_features * kernel_dims <= max_lanes:
        return out_features
    for t in range(out_features, 0, -1):
        if out_features % t == 0 and t * kernel_dims <= max_lanes \
                and (t * kernel_dims) % 128 == 0:
            return t
    return out_features


def minibatch_discrimination(x, T, *, mean=False):
    """x: [B, in_features], T: [in_features, out_features, kernel_dims]."""
    B, in_features = x.shape
    t_in, out_features, kernel_dims = T.shape
    assert t_in == in_features

    to = _pick_out_tile(out_features, kernel_dims)
    n_tiles = out_features // to

    # [in, out*kd]: grid step o owns the lane slice [o*to*kd, (o+1)*to*kd).
    t_flat = T.reshape(in_features, out_features * kernel_dims)

    # Block-diagonal ones: lane r (within a tile) belongs to out-feature r//kd.
    seg = (jnp.arange(to * kernel_dims)[:, None] // kernel_dims
           == jnp.arange(to)[None, :]).astype(jnp.float32)

    kernel = functools.partial(_minibatch_disc_kernel, batch=B, mean=mean)

    o_b_tiles = pl.pallas_call(
        kernel,
        out_shape=jax.ShapeDtypeStruct((n_tiles, B, to), x.dtype),
        grid=(n_tiles,),
        in_specs=[
            pl.BlockSpec((B, in_features), lambda o: (0, 0)),
            pl.BlockSpec((in_features, to * kernel_dims), lambda o: (0, o)),
            pl.BlockSpec((to * kernel_dims, to), lambda o: (0, 0)),
        ],
        out_specs=pl.BlockSpec((1, B, to), lambda o: (o, 0, 0)),
        compiler_params=pltpu.CompilerParams(
            dimension_semantics=("parallel",)),
    )(x, t_flat, seg)

    # [n_tiles, B, to] -> [B, out_features]
    o_b = jnp.transpose(o_b_tiles, (1, 0, 2)).reshape(B, out_features)
    # torch.cat([x, o_b], 1) -- done outside the kernel (no x writeback).
    return jnp.concatenate([x, o_b], axis=1)


def _reference(x, T, mean=False):
    B, in_features = x.shape
    _, out_features, kernel_dims = T.shape
    matrices = (x @ T.reshape(in_features, -1)).reshape(B, out_features,
                                                        kernel_dims)
    M = matrices[None]                    # [1, B, out, kd]
    M_T = jnp.transpose(M, (1, 0, 2, 3))  # [B, 1, out, kd]
    norm = jnp.abs(M - M_T).sum(3)        # [B, B, out]
    expnorm = jnp.exp(-norm)
    o_b = expnorm.sum(0) - 1.0
    if mean:
        o_b = o_b / (B - 1)
    return jnp.concatenate([x, o_b], axis=1)


if __name__ == "__main__":
    B = 8
    in_features = 32
    out_features = 8
    kernel_dims = 64          # module default

    key = jax.random.PRNGKey(0)
    kx, kt = jax.random.split(key)
    # Scale x down so the pairwise L1 norms are moderate and o_b is O(0.1) --
    # keeps the correctness check numerically meaningful.
    x = 0.01 * jax.random.normal(kx, (B, in_features), dtype=jnp.float32)
    # nn.init.normal_(self.T, 0, 1): [in_features, out_features, kernel_dims]
    T = jax.random.normal(kt, (in_features, out_features, kernel_dims),
                          dtype=jnp.float32)

    for mean in (False, True):
        out = minibatch_discrimination(x, T, mean=mean)
        out = jax.block_until_ready(out)
        ref = _reference(x, T, mean=mean)
        assert out.shape == (B, in_features + out_features)
        # Tolerances account for bf16-pass MXU matmuls vs. the exact f32
        # reduction in the reference.
        assert jnp.allclose(out, ref, rtol=1e-2, atol=2e-3), \
            f"mismatch vs reference (mean={mean})"

    print("KERNEL_OK")
</pallas_src>

<mosaic_0001>
module attributes {stable_mosaic.version = 11 : i64} {
  func.func @_minibatch_disc_kernel(%arg0: i32, %arg1: memref<8x32xf32, #tpu.memory_space<vmem>>, %arg2: memref<32x512xf32, #tpu.memory_space<vmem>>, %arg3: memref<512x8xf32, #tpu.memory_space<vmem>>, %arg4: memref<1x8x8xf32, #tpu.memory_space<vmem>>) attributes {dimension_semantics = [#tpu.dimension_semantics<parallel>], iteration_bounds = array<i64: 1>, scalar_prefetch = 0 : i64, scratch_operands = 0 : i64, tpu.core_type = #tpu.core_type<tc>, window_params = [{pipeline_mode = #tpu.pipeline_mode<synchronous>, transform_indices = @transform_0, window_bounds = array<i64: 8, 32>}, {transform_indices = @transform_1, window_bounds = array<i64: 32, 512>}, {pipeline_mode = #tpu.pipeline_mode<synchronous>, transform_indices = @transform_2, window_bounds = array<i64: 512, 8>}, {transform_indices = @transform_3, window_bounds = array<i64: 1, 8, 8>}]} {
    %c0 = arith.constant 0 : index
    %c0_0 = arith.constant 0 : index
    %0 = vector.load %arg1[%c0, %c0_0] : memref<8x32xf32, #tpu.memory_space<vmem>>, vector<8x32xf32>
    %c0_1 = arith.constant 0 : index
    %c0_2 = arith.constant 0 : index
    %1 = vector.load %arg2[%c0_1, %c0_2] : memref<32x512xf32, #tpu.memory_space<vmem>>, vector<32x512xf32>
    %c0_3 = arith.constant 0 : index
    %c0_4 = arith.constant 0 : index
    %2 = vector.load %arg3[%c0_3, %c0_4] : memref<512x8xf32, #tpu.memory_space<vmem>>, vector<512x8xf32>
    %cst = arith.constant dense<0.000000e+00> : vector<8x512xf32>
    %3 = tpu.matmul %0, %1, %cst {dimension_numbers = #tpu.dot_dimension_numbers<[1], [0], [0], [1], [0, 0, 1, 1], [], []>} : vector<8x32xf32>, vector<32x512xf32>, vector<8x512xf32> -> vector<8x512xf32>
    %cst_5 = arith.constant 0.000000e+00 : f32
    %4 = vector.broadcast %cst_5 : f32 to vector<8x8xf32>
    %c1_i32 = arith.constant 1 : i32
    %5 = tpu.dynamic_rotate %3 by %c1_i32 dim 0 : vector<8x512xf32>, i32 -> vector<8x512xf32>
    %6 = arith.subf %3, %5 : vector<8x512xf32>
    %7 = math.absf %6 : vector<8x512xf32>
    %cst_6 = arith.constant dense<0.000000e+00> : vector<8x8xf32>
    %8 = tpu.matmul %7, %2, %cst_6 {dimension_numbers = #tpu.dot_dimension_numbers<[1], [0], [0], [1], [0, 0, 1, 1], [], []>} : vector<8x512xf32>, vector<512x8xf32>, vector<8x8xf32> -> vector<8x8xf32>
    %cst_7 = arith.constant 0.000000e+00 : f32
    %9 = vector.broadcast %cst_7 : f32 to vector<8x8xf32>
    %10 = arith.subf %9, %8 : vector<8x8xf32>
    %11 = math.exp %10 : vector<8x8xf32>
    %12 = arith.addf %4, %11 : vector<8x8xf32>
    %c7_i32 = arith.constant 7 : i32
    %13 = tpu.dynamic_rotate %11 by %c7_i32 dim 0 : vector<8x8xf32>, i32 -> vector<8x8xf32>
    %14 = arith.addf %12, %13 : vector<8x8xf32>
    %c2_i32 = arith.constant 2 : i32
    %15 = tpu.dynamic_rotate %3 by %c2_i32 dim 0 : vector<8x512xf32>, i32 -> vector<8x512xf32>
    %16 = arith.subf %3, %15 : vector<8x512xf32>
    %17 = math.absf %16 : vector<8x512xf32>
    %cst_8 = arith.constant dense<0.000000e+00> : vector<8x8xf32>
    %18 = tpu.matmul %17, %2, %cst_8 {dimension_numbers = #tpu.dot_dimension_numbers<[1], [0], [0], [1], [0, 0, 1, 1], [], []>} : vector<8x512xf32>, vector<512x8xf32>, vector<8x8xf32> -> vector<8x8xf32>
    %cst_9 = arith.constant 0.000000e+00 : f32
    %19 = vector.broadcast %cst_9 : f32 to vector<8x8xf32>
    %20 = arith.subf %19, %18 : vector<8x8xf32>
    %21 = math.exp %20 : vector<8x8xf32>
    %22 = arith.addf %14, %21 : vector<8x8xf32>
    %c6_i32 = arith.constant 6 : i32
    %23 = tpu.dynamic_rotate %21 by %c6_i32 dim 0 : vector<8x8xf32>, i32 -> vector<8x8xf32>
    %24 = arith.addf %22, %23 : vector<8x8xf32>
    %c3_i32 = arith.constant 3 : i32
    %25 = tpu.dynamic_rotate %3 by %c3_i32 dim 0 : vector<8x512xf32>, i32 -> vector<8x512xf32>
    %26 = arith.subf %3, %25 : vector<8x512xf32>
    %27 = math.absf %26 : vector<8x512xf32>
    %cst_10 = arith.constant dense<0.000000e+00> : vector<8x8xf32>
    %28 = tpu.matmul %27, %2, %cst_10 {dimension_numbers = #tpu.dot_dimension_numbers<[1], [0], [0], [1], [0, 0, 1, 1], [], []>} : vector<8x512xf32>, vector<512x8xf32>, vector<8x8xf32> -> vector<8x8xf32>
    %cst_11 = arith.constant 0.000000e+00 : f32
    %29 = vector.broadcast %cst_11 : f32 to vector<8x8xf32>
    %30 = arith.subf %29, %28 : vector<8x8xf32>
    %31 = math.exp %30 : vector<8x8xf32>
    %32 = arith.addf %24, %31 : vector<8x8xf32>
    %c5_i32 = arith.constant 5 : i32
    %33 = tpu.dynamic_rotate %31 by %c5_i32 dim 0 : vector<8x8xf32>, i32 -> vector<8x8xf32>
    %34 = arith.addf %32, %33 : vector<8x8xf32>
    %c4_i32 = arith.constant 4 : i32
    %35 = tpu.dynamic_rotate %3 by %c4_i32 dim 0 : vector<8x512xf32>, i32 -> vector<8x512xf32>
    %36 = arith.subf %3, %35 : vector<8x512xf32>
    %37 = math.absf %36 : vector<8x512xf32>
    %cst_12 = arith.constant dense<0.000000e+00> : vector<8x8xf32>
    %38 = tpu.matmul %37, %2, %cst_12 {dimension_numbers = #tpu.dot_dimension_numbers<[1], [0], [0], [1], [0, 0, 1, 1], [], []>} : vector<8x512xf32>, vector<512x8xf32>, vector<8x8xf32> -> vector<8x8xf32>
    %cst_13 = arith.constant 0.000000e+00 : f32
    %39 = vector.broadcast %cst_13 : f32 to vector<8x8xf32>
    %40 = arith.subf %39, %38 : vector<8x8xf32>
    %41 = math.exp %40 : vector<8x8xf32>
    %42 = arith.addf %34, %41 : vector<8x8xf32>
    %c0_14 = arith.constant 0 : index
    %c0_15 = arith.constant 0 : index
    %c0_16 = arith.constant 0 : index
    %43 = vector.load %arg4[%c0_14, %c0_15, %c0_16] : memref<1x8x8xf32, #tpu.memory_space<vmem>>, vector<1x8x8xf32>
    %44 = vector.shape_cast %43 : vector<1x8x8xf32> to vector<8x8xf32>
    %45 = vector.shape_cast %42 : vector<8x8xf32> to vector<1x8x8xf32>
    tpu.vector_store %arg4[%c0_14, %c0_15, %c0_16], %45 {strides = array<i32>} : memref<1x8x8xf32, #tpu.memory_space<vmem>>, vector<1x8x8xf32>,
    return
  }
  func.func @transform_0(%arg0: i32) -> (i32, i32) {
    %c0_i32 = arith.constant 0 : i32
    %c0_i32_0 = arith.constant 0 : i32
    %c0_i32_1 = arith.constant 0 : i32
    return %c0_i32, %c0_i32_0 : i32, i32
  }
  func.func @transform_1(%arg0: i32) -> (i32, i32) {
    %c0_i32 = arith.constant 0 : i32
    %c0_i32_0 = arith.constant 0 : i32
    return %c0_i32, %arg0 : i32, i32
  }
  func.func @transform_2(%arg0: i32) -> (i32, i32) {
    %c0_i32 = arith.constant 0 : i32
    %c0_i32_0 = arith.constant 0 : i32
    %c0_i32_1 = arith.constant 0 : i32
    return %c0_i32, %c0_i32_0 : i32, i32
  }
  func.func @transform_3(%arg0: i32) -> (i32, i32, i32) {
    %c0_i32 = arith.constant 0 : i32
    %c0_i32_0 = arith.constant 0 : i32
    %c0_i32_1 = arith.constant 0 : i32
    return %arg0, %c0_i32, %c0_i32_0 : i32, i32, i32
  }
}

</mosaic_0001>

<llo_original>
// kernel: tpu_custom_call.1
$region0: #{tpu_custom_call.1}
  #allocation0 [shape = 'u32[]', space=smem, size = 0x4, offset = 0x4, fixed_abs, tag = 'smem constant byte address 0x4 - core index']
  #allocation1 [shape = 'u32[72,128]{1,0:T(1,128)}', space=vmem, size = 0x9000, scoped, tag = 'internal scratch']
  %s0 = inlined_call_operand.vmem [shape: f32[8,32], index: 0, kind: input, shape index: {}]
  %s1 = inlined_call_operand.vmem [shape: f32[32,512], index: 1, kind: input, shape index: {}]
  %s2 = inlined_call_operand.vmem [shape: f32[512,8], index: 2, kind: input, shape index: {}]
  %s3 = inlined_call_operand.hbm [shape: f32[1,8,8], index: 3, kind: output, shape index: {}]
  %s4 = sld [smem:[#allocation0]]
  $region22: #{tpu_custom_call.1} parent=0
    _
  %s6 = ssub.s32 1, %s4
  %s7 = scalar_select 0, %s6, %s4
  $region1: #{tpu_custom_call.1} parent=0
    #allocation2 [shape = 'u8[4096]{0}', space=vmem, size = 0x1000, scoped, tag = 'output window, operand 0, single buffered']
    #allocation3 [shape = 's32[1]{0}', space=sflag, size = 0x4, scoped, tag = 'scoped memory for tpu_custom_call.1']
    %8 = vsyncpa [#allocation3], 0
    // Predicated region
    $region2: #{tpu_custom_call.1} parent=1 // pred_check
      _
    $region3: #{tpu_custom_call.1} parent=1 // pred_check_branch
      %10 = sbr.rel (0) target = $region5
    $region4: #{tpu_custom_call.1} parent=1 // pred_region
      _
    $region5: #{tpu_custom_call.1} parent=1 // pred_fallthru
      _
    // Predicated region
    $region6: #{tpu_custom_call.1} parent=1 // pred_check
      _
    $region7: #{tpu_custom_call.1} parent=1 // pred_check_branch
      %12 = sbr.rel (0) target = $region9
    $region8: #{tpu_custom_call.1} parent=1 // pred_region
      _
    $region9: #{tpu_custom_call.1} parent=1 // pred_fallthru
      _
    // Predicated region
    $region10: #{tpu_custom_call.1} parent=1 // pred_check
      _
    $region11: #{tpu_custom_call.1} parent=1 // pred_check_branch
      %14 = sbr.rel (0) target = $region13
    $region12: #{tpu_custom_call.1} parent=1 // pred_region
      _
    $region13: #{tpu_custom_call.1} parent=1 // pred_fallthru
      _
    %v15 = vld [vmem:[%s0] sm:$0xff]
    %v16 = vld [vmem:[%s1] sm:$0xff]
    %v17 = vld [vmem:[%s1 + $0x8] sm:$0xff]
    %v18 = vld [vmem:[%s1 + $0x10] sm:$0xff]
    %v19 = vld [vmem:[%s1 + $0x18] sm:$0xff]
    %v20 = vld [vmem:[%s1 + $0x20] sm:$0xff]
    %v21 = vld [vmem:[%s1 + $0x28] sm:$0xff]
    %v22 = vld [vmem:[%s1 + $0x30] sm:$0xff]
    %v23 = vld [vmem:[%s1 + $0x38] sm:$0xff]
    %v24 = vld [vmem:[%s1 + $0x40] sm:$0xff]
    %v25 = vld [vmem:[%s1 + $0x48] sm:$0xff]
    %v26 = vld [vmem:[%s1 + $0x50] sm:$0xff]
    %v27 = vld [vmem:[%s1 + $0x58] sm:$0xff]
    %v28 = vld [vmem:[%s1 + $0x60] sm:$0xff]
    %v29 = vld [vmem:[%s1 + $0x68] sm:$0xff]
    %v30 = vld [vmem:[%s1 + $0x70] sm:$0xff]
    %v31 = vld [vmem:[%s1 + $0x78] sm:$0xff]
    %v32 = vld [vmem:[%s2] sm:$0xff]
    %v33 = vld [vmem:[%s2 + $0x8] sm:$0xff]
    %v34 = vld [vmem:[%s2 + $0x10] sm:$0xff]
    %v35 = vld [vmem:[%s2 + $0x18] sm:$0xff]
    %v36 = vld [vmem:[%s2 + $0x20] sm:$0xff]
    %v37 = vld [vmem:[%s2 + $0x28] sm:$0xff]
    %v38 = vld [vmem:[%s2 + $0x30] sm:$0xff]
    %v39 = vld [vmem:[%s2 + $0x38] sm:$0xff]
    %v40 = vld [vmem:[%s2 + $0x40] sm:$0xff]
    %v41 = vld [vmem:[%s2 + $0x48] sm:$0xff]
    %v42 = vld [vmem:[%s2 + $0x50] sm:$0xff]
    %v43 = vld [vmem:[%s2 + $0x58] sm:$0xff]
    %v44 = vld [vmem:[%s2 + $0x60] sm:$0xff]
    %v45 = vld [vmem:[%s2 + $0x68] sm:$0xff]
    %v46 = vld [vmem:[%s2 + $0x70] sm:$0xff]
    %v47 = vld [vmem:[%s2 + $0x78] sm:$0xff]
    %v48 = vld [vmem:[%s2 + $0x80] sm:$0xff]
    %v49 = vld [vmem:[%s2 + $0x88] sm:$0xff]
    %v50 = vld [vmem:[%s2 + $0x90] sm:$0xff]
    %v51 = vld [vmem:[%s2 + $0x98] sm:$0xff]
    %v52 = vld [vmem:[%s2 + $0xa0] sm:$0xff]
    %v53 = vld [vmem:[%s2 + $0xa8] sm:$0xff]
    %v54 = vld [vmem:[%s2 + $0xb0] sm:$0xff]
    %v55 = vld [vmem:[%s2 + $0xb8] sm:$0xff]
    %v56 = vld [vmem:[%s2 + $0xc0] sm:$0xff]
    %v57 = vld [vmem:[%s2 + $0xc8] sm:$0xff]
    %v58 = vld [vmem:[%s2 + $0xd0] sm:$0xff]
    %v59 = vld [vmem:[%s2 + $0xd8] sm:$0xff]
    %v60 = vld [vmem:[%s2 + $0xe0] sm:$0xff]
    %v61 = vld [vmem:[%s2 + $0xe8] sm:$0xff]
    %v62 = vld [vmem:[%s2 + $0xf0] sm:$0xff]
    %v63 = vld [vmem:[%s2 + $0xf8] sm:$0xff]
    %v64 = vld [vmem:[%s2 + $0x100] sm:$0xff]
    %v65 = vld [vmem:[%s2 + $0x108] sm:$0xff]
    %v66 = vld [vmem:[%s2 + $0x110] sm:$0xff]
    %v67 = vld [vmem:[%s2 + $0x118] sm:$0xff]
    %v68 = vld [vmem:[%s2 + $0x120] sm:$0xff]
    %v69 = vld [vmem:[%s2 + $0x128] sm:$0xff]
    %v70 = vld [vmem:[%s2 + $0x130] sm:$0xff]
    %v71 = vld [vmem:[%s2 + $0x138] sm:$0xff]
    %v72 = vld [vmem:[%s2 + $0x140] sm:$0xff]
    %v73 = vld [vmem:[%s2 + $0x148] sm:$0xff]
    %v74 = vld [vmem:[%s2 + $0x150] sm:$0xff]
    %v75 = vld [vmem:[%s2 + $0x158] sm:$0xff]
    %v76 = vld [vmem:[%s2 + $0x160] sm:$0xff]
    %v77 = vld [vmem:[%s2 + $0x168] sm:$0xff]
    %v78 = vld [vmem:[%s2 + $0x170] sm:$0xff]
    %v79 = vld [vmem:[%s2 + $0x178] sm:$0xff]
    %v80 = vld [vmem:[%s2 + $0x180] sm:$0xff]
    %v81 = vld [vmem:[%s2 + $0x188] sm:$0xff]
    %v82 = vld [vmem:[%s2 + $0x190] sm:$0xff]
    %v83 = vld [vmem:[%s2 + $0x198] sm:$0xff]
    %v84 = vld [vmem:[%s2 + $0x1a0] sm:$0xff]
    %v85 = vld [vmem:[%s2 + $0x1a8] sm:$0xff]
    %v86 = vld [vmem:[%s2 + $0x1b0] sm:$0xff]
    %v87 = vld [vmem:[%s2 + $0x1b8] sm:$0xff]
    %v88 = vld [vmem:[%s2 + $0x1c0] sm:$0xff]
    %v89 = vld [vmem:[%s2 + $0x1c8] sm:$0xff]
    %v90 = vld [vmem:[%s2 + $0x1d0] sm:$0xff]
    %v91 = vld [vmem:[%s2 + $0x1d8] sm:$0xff]
    %v92 = vld [vmem:[%s2 + $0x1e0] sm:$0xff]
    %v93 = vld [vmem:[%s2 + $0x1e8] sm:$0xff]
    %v94 = vld [vmem:[%s2 + $0x1f0] sm:$0xff]
    %v95 = vld [vmem:[%s2 + $0x1f8] sm:$0xff]
    %vm96 = vcmask 261120
    %v98 = vsel %vm96, %v15, 0
    %100 = vmatpush.msra.mxu0 0.0
    %101 = vmatpush.msra.mxu0 0.0
    %102 = vmatpush.msra.mxu0 0.0
    %103 = vmatpush.msra.mxu0 0.0
    %104 = vmatpush.msra.mxu0 0.0
    %105 = vmatpush.msra.mxu0 0.0
    %106 = vmatpush.msra.mxu0 0.0
    %107 = vmatpush.msra.mxu0 0.0
    %108 = vmatpush.msra.mxu0 0.0
    %109 = vmatpush.msra.mxu0 0.0
    %110 = vmatpush.msra.mxu0 0.0
    %111 = vmatpush.msra.mxu0 0.0
    %112 = vmatpush.msra.mxu0 %v28
    %113 = vmatpush.msra.mxu0 %v24
    %114 = vmatpush.msra.mxu0 %v20
    %115 = vmatpush.msra.mxu0 %v16
    %116 = vmatmul.f32.gmra.mxu0 %v98
    %v117 = vpop.f32.mrf.mxu0
    %v118 = vadd.f32 0.0, %v117
    %119 = vdwg.mxu0
    %120 = vmatpush.msra.mxu0 0.0
    %121 = vmatpush.msra.mxu0 0.0
    %122 = vmatpush.msra.mxu0 0.0
    %123 = vmatpush.msra.mxu0 0.0
    %124 = vmatpush.msra.mxu0 0.0
    %125 = vmatpush.msra.mxu0 0.0
    %126 = vmatpush.msra.mxu0 0.0
    %127 = vmatpush.msra.mxu0 0.0
    %128 = vmatpush.msra.mxu0 0.0
    %129 = vmatpush.msra.mxu0 0.0
    %130 = vmatpush.msra.mxu0 0.0
    %131 = vmatpush.msra.mxu0 0.0
    %132 = vmatpush.msra.mxu0 %v29
    %133 = vmatpush.msra.mxu0 %v25
    %134 = vmatpush.msra.mxu0 %v21
    %135 = vmatpush.msra.mxu0 %v17
    %136 = vmatmul.f32.gmra.mxu0 %v98
    %v137 = vpop.f32.mrf.mxu0
    %v138 = vadd.f32 0.0, %v137
    %139 = vdwg.mxu0
    %140 = vmatpush.msra.mxu0 0.0
    %141 = vmatpush.msra.mxu0 0.0
    %142 = vmatpush.msra.mxu0 0.0
    %143 = vmatpush.msra.mxu0 0.0
    %144 = vmatpush.msra.mxu0 0.0
    %145 = vmatpush.msra.mxu0 0.0
    %146 = vmatpush.msra.mxu0 0.0
    %147 = vmatpush.msra.mxu0 0.0
    %148 = vmatpush.msra.mxu0 0.0
    %149 = vmatpush.msra.mxu0 0.0
    %150 = vmatpush.msra.mxu0 0.0
    %151 = vmatpush.msra.mxu0 0.0
    %152 = vmatpush.msra.mxu0 %v30
    %153 = vmatpush.msra.mxu0 %v26
    %154 = vmatpush.msra.mxu0 %v22
    %155 = vmatpush.msra.mxu0 %v18
    %156 = vmatmul.f32.gmra.mxu0 %v98
    %v157 = vpop.f32.mrf.mxu0
    %v158 = vadd.f32 0.0, %v157
    %159 = vdwg.mxu0
    %160 = vmatpush.msra.mxu0 0.0
    %161 = vmatpush.msra.mxu0 0.0
    %162 = vmatpush.msra.mxu0 0.0
    %163 = vmatpush.msra.mxu0 0.0
    %164 = vmatpush.msra.mxu0 0.0
    %165 = vmatpush.msra.mxu0 0.0
    %166 = vmatpush.msra.mxu0 0.0
    %167 = vmatpush.msra.mxu0 0.0
    %168 = vmatpush.msra.mxu0 0.0
    %169 = vmatpush.msra.mxu0 0.0
    %170 = vmatpush.msra.mxu0 0.0
    %171 = vmatpush.msra.mxu0 0.0
    %172 = vmatpush.msra.mxu0 %v31
    %173 = vmatpush.msra.mxu0 %v27
    %174 = vmatpush.msra.mxu0 %v23
    %175 = vmatpush.msra.mxu0 %v19
    %176 = vmatmul.f32.gmra.mxu0 %v98
    %v177 = vpop.f32.mrf.mxu0
    %v178 = vadd.f32 0.0, %v177
    %179 = vdwg.mxu0
    %v180 = vrot.slane %v118, 7
    %v181 = vrot.slane %v138, 7
    %v182 = vrot.slane %v158, 7
    %v183 = vrot.slane %v178, 7
    %v184 = vsub.f32 %v118, %v180
    %v185 = vsub.f32 %v138, %v181
    %v186 = vsub.f32 %v158, %v182
    %v187 = vsub.f32 %v178, %v183
    %v188 = vand.u32 2147483647, %v184
    %v189 = vand.u32 2147483647, %v185
    %v190 = vand.u32 2147483647, %v186
    %v191 = vand.u32 2147483647, %v187
    %192 = vmatpush.msra.mxu0 %v47
    %193 = vmatpush.msra.mxu0 %v46
    %194 = vmatpush.msra.mxu0 %v45
    %195 = vmatpush.msra.mxu0 %v44
    %196 = vmatpush.msra.mxu0 %v43
    %197 = vmatpush.msra.mxu0 %v42
    %198 = vmatpush.msra.mxu0 %v41
    %199 = vmatpush.msra.mxu0 %v40
    %200 = vmatpush.msra.mxu0 %v39
    %201 = vmatpush.msra.mxu0 %v38
    %202 = vmatpush.msra.mxu0 %v37
    %203 = vmatpush.msra.mxu0 %v36
    %204 = vmatpush.msra.mxu0 %v35
    %205 = vmatpush.msra.mxu0 %v34
    %206 = vmatpush.msra.mxu0 %v33
    %207 = vmatpush.msra.mxu0 %v32
    %208 = vmatmul.f32.gmra.mxu0 %v188
    %v209 = vpop.f32.mrf.mxu0
    %v210 = vadd.f32 0.0, %v209
    %211 = vdwg.mxu0
    %212 = vmatpush.msra.mxu0 %v63
    %213 = vmatpush.msra.mxu0 %v62
    %214 = vmatpush.msra.mxu0 %v61
    %215 = vmatpush.msra.mxu0 %v60
    %216 = vmatpush.msra.mxu0 %v59
    %217 = vmatpush.msra.mxu0 %v58
    %218 = vmatpush.msra.mxu0 %v57
    %219 = vmatpush.msra.mxu0 %v56
    %220 = vmatpush.msra.mxu0 %v55
    %221 = vmatpush.msra.mxu0 %v54
    %222 = vmatpush.msra.mxu0 %v53
    %223 = vmatpush.msra.mxu0 %v52
    %224 = vmatpush.msra.mxu0 %v51
    %225 = vmatpush.msra.mxu0 %v50
    %226 = vmatpush.msra.mxu0 %v49
    %227 = vmatpush.msra.mxu0 %v48
    %228 = vmatmul.f32.gmra.mxu0 %v189
    %v229 = vpop.f32.mrf.mxu0
    %v230 = vadd.f32 %v210, %v229
    %231 = vdwg.mxu0
    %232 = vmatpush.msra.mxu0 %v79
    %233 = vmatpush.msra.mxu0 %v78
    %234 = vmatpush.msra.mxu0 %v77
    %235 = vmatpush.msra.mxu0 %v76
    %236 = vmatpush.msra.mxu0 %v75
    %237 = vmatpush.msra.mxu0 %v74
    %238 = vmatpush.msra.mxu0 %v73
    %239 = vmatpush.msra.mxu0 %v72
    %240 = vmatpush.msra.mxu0 %v71
    %241 = vmatpush.msra.mxu0 %v70
    %242 = vmatpush.msra.mxu0 %v69
    %243 = vmatpush.msra.mxu0 %v68
    %244 = vmatpush.msra.mxu0 %v67
    %245 = vmatpush.msra.mxu0 %v66
    %246 = vmatpush.msra.mxu0 %v65
    %247 = vmatpush.msra.mxu0 %v64
    %248 = vmatmul.f32.gmra.mxu0 %v190
    %v249 = vpop.f32.mrf.mxu0
    %v250 = vadd.f32 %v230, %v249
    %251 = vdwg.mxu0
    %252 = vmatpush.msra.mxu0 %v95
    %253 = vmatpush.msra.mxu0 %v94
    %254 = vmatpush.msra.mxu0 %v93
    %255 = vmatpush.msra.mxu0 %v92
    %256 = vmatpush.msra.mxu0 %v91
    %257 = vmatpush.msra.mxu0 %v90
    %258 = vmatpush.msra.mxu0 %v89
    %259 = vmatpush.msra.mxu0 %v88
    %260 = vmatpush.msra.mxu0 %v87
    %261 = vmatpush.msra.mxu0 %v86
    %262 = vmatpush.msra.mxu0 %v85
    %263 = vmatpush.msra.mxu0 %v84
    %264 = vmatpush.msra.mxu0 %v83
    %265 = vmatpush.msra.mxu0 %v82
    %266 = vmatpush.msra.mxu0 %v81
    %267 = vmatpush.msra.mxu0 %v80
    %268 = vmatmul.f32.gmra.mxu0 %v191
    %v269 = vpop.f32.mrf.mxu0
    %v270 = vadd.f32 %v250, %v269
    %271 = vdwg.mxu0
    %v272 = vsub.f32 0.0, %v270
    %v273 = vmul.f32 %v272, 1.442695
    %v274 = vpow.pop %v273
    %v275 = vadd.f32 %v274, 0.0
    %v276 = vrot.slane %v274, 1
    %v277 = vadd.f32 %v275, %v276
    %v278 = vrot.slane %v118, 6
    %v279 = vrot.slane %v138, 6
    %v280 = vrot.slane %v158, 6
    %v281 = vrot.slane %v178, 6
    %v282 = vsub.f32 %v118, %v278
    %v283 = vsub.f32 %v138, %v279
    %v284 = vsub.f32 %v158, %v280
    %v285 = vsub.f32 %v178, %v281
    %v286 = vand.u32 2147483647, %v282
    %v287 = vand.u32 2147483647, %v283
    %v288 = vand.u32 2147483647, %v284
    %v289 = vand.u32 2147483647, %v285
    %290 = vmatpush.msra.mxu0 %v47
    %291 = vmatpush.msra.mxu0 %v46
    %292 = vmatpush.msra.mxu0 %v45
    %293 = vmatpush.msra.mxu0 %v44
    %294 = vmatpush.msra.mxu0 %v43
    %295 = vmatpush.msra.mxu0 %v42
    %296 = vmatpush.msra.mxu0 %v41
    %297 = vmatpush.msra.mxu0 %v40
    %298 = vmatpush.msra.mxu0 %v39
    %299 = vmatpush.msra.mxu0 %v38
    %300 = vmatpush.msra.mxu0 %v37
    %301 = vmatpush.msra.mxu0 %v36
    %302 = vmatpush.msra.mxu0 %v35
    %303 = vmatpush.msra.mxu0 %v34
    %304 = vmatpush.msra.mxu0 %v33
    %305 = vmatpush.msra.mxu0 %v32
    %306 = vmatmul.f32.gmra.mxu0 %v286
    %v307 = vpop.f32.mrf.mxu0
    %v308 = vadd.f32 0.0, %v307
    %309 = vdwg.mxu0
    %310 = vmatpush.msra.mxu0 %v63
    %311 = vmatpush.msra.mxu0 %v62
    %312 = vmatpush.msra.mxu0 %v61
    %313 = vmatpush.msra.mxu0 %v60
    %314 = vmatpush.msra.mxu0 %v59
    %315 = vmatpush.msra.mxu0 %v58
    %316 = vmatpush.msra.mxu0 %v57
    %317 = vmatpush.msra.mxu0 %v56
    %318 = vmatpush.msra.mxu0 %v55
    %319 = vmatpush.msra.mxu0 %v54
    %320 = vmatpush.msra.mxu0 %v53
    %321 = vmatpush.msra.mxu0 %v52
    %322 = vmatpush.msra.mxu0 %v51
    %323 = vmatpush.msra.mxu0 %v50
    %324 = vmatpush.msra.mxu0 %v49
    %325 = vmatpush.msra.mxu0 %v48
    %326 = vmatmul.f32.gmra.mxu0 %v287
    %v327 = vpop.f32.mrf.mxu0
    %v328 = vadd.f32 %v308, %v327
    %329 = vdwg.mxu0
    %330 = vmatpush.msra.mxu0 %v79
    %331 = vmatpush.msra.mxu0 %v78
    %332 = vmatpush.msra.mxu0 %v77
    %333 = vmatpush.msra.mxu0 %v76
    %334 = vmatpush.msra.mxu0 %v75
    %335 = vmatpush.msra.mxu0 %v74
    %336 = vmatpush.msra.mxu0 %v73
    %337 = vmatpush.msra.mxu0 %v72
    %338 = vmatpush.msra.mxu0 %v71
    %339 = vmatpush.msra.mxu0 %v70
    %340 = vmatpush.msra.mxu0 %v69
    %341 = vmatpush.msra.mxu0 %v68
    %342 = vmatpush.msra.mxu0 %v67
    %343 = vmatpush.msra.mxu0 %v66
    %344 = vmatpush.msra.mxu0 %v65
    %345 = vmatpush.msra.mxu0 %v64
    %346 = vmatmul.f32.gmra.mxu0 %v288
    %v347 = vpop.f32.mrf.mxu0
    %v348 = vadd.f32 %v328, %v347
    %349 = vdwg.mxu0
    %350 = vmatpush.msra.mxu0 %v95
    %351 = vmatpush.msra.mxu0 %v94
    %352 = vmatpush.msra.mxu0 %v93
    %353 = vmatpush.msra.mxu0 %v92
    %354 = vmatpush.msra.mxu0 %v91
    %355 = vmatpush.msra.mxu0 %v90
    %356 = vmatpush.msra.mxu0 %v89
    %357 = vmatpush.msra.mxu0 %v88
    %358 = vmatpush.msra.mxu0 %v87
    %359 = vmatpush.msra.mxu0 %v86
    %360 = vmatpush.msra.mxu0 %v85
    %361 = vmatpush.msra.mxu0 %v84
    %362 = vmatpush.msra.mxu0 %v83
    %363 = vmatpush.msra.mxu0 %v82
    %364 = vmatpush.msra.mxu0 %v81
    %365 = vmatpush.msra.mxu0 %v80
    %366 = vmatmul.f32.gmra.mxu0 %v289
    %v367 = vpop.f32.mrf.mxu0
    %v368 = vadd.f32 %v348, %v367
    %369 = vdwg.mxu0
    %v370 = vsub.f32 0.0, %v368
    %v371 = vmul.f32 %v370, 1.442695
    %v372 = vpow.pop %v371
    %v373 = vadd.f32 %v277, %v372
    %v374 = vrot.slane %v372, 2
    %v375 = vadd.f32 %v373, %v374
    %v376 = vrot.slane %v118, 5
    %v377 = vrot.slane %v138, 5
    %v378 = vrot.slane %v158, 5
    %v379 = vrot.slane %v178, 5
    %v380 = vsub.f32 %v118, %v376
    %v381 = vsub.f32 %v138, %v377
    %v382 = vsub.f32 %v158, %v378
    %v383 = vsub.f32 %v178, %v379
    %v384 = vand.u32 2147483647, %v380
    %v385 = vand.u32 2147483647, %v381
    %v386 = vand.u32 2147483647, %v382
    %v387 = vand.u32 2147483647, %v383
    %388 = vmatpush.msra.mxu0 %v47
    %389 = vmatpush.msra.mxu0 %v46
    %390 = vmatpush.msra.mxu0 %v45
    %391 = vmatpush.msra.mxu0 %v44
    %392 = vmatpush.msra.mxu0 %v43
    %393 = vmatpush.msra.mxu0 %v42
    %394 = vmatpush.msra.mxu0 %v41
    %395 = vmatpush.msra.mxu0 %v40
    %396 = vmatpush.msra.mxu0 %v39
    %397 = vmatpush.msra.mxu0 %v38
    %398 = vmatpush.msra.mxu0 %v37
    %399 = vmatpush.msra.mxu0 %v36
    %400 = vmatpush.msra.mxu0 %v35
    %401 = vmatpush.msra.mxu0 %v34
    %402 = vmatpush.msra.mxu0 %v33
    %403 = vmatpush.msra.mxu0 %v32
    %404 = vmatmul.f32.gmra.mxu0 %v384
    %v405 = vpop.f32.mrf.mxu0
    %v406 = vadd.f32 0.0, %v405
    %407 = vdwg.mxu0
    %408 = vmatpush.msra.mxu0 %v63
    %409 = vmatpush.msra.mxu0 %v62
    %410 = vmatpush.msra.mxu0 %v61
    %411 = vmatpush.msra.mxu0 %v60
    %412 = vmatpush.msra.mxu0 %v59
    %413 = vmatpush.msra.mxu0 %v58
    %414 = vmatpush.msra.mxu0 %v57
    %415 = vmatpush.msra.mxu0 %v56
    %416 = vmatpush.msra.mxu0 %v55
    %417 = vmatpush.msra.mxu0 %v54
    %418 = vmatpush.msra.mxu0 %v53
    %419 = vmatpush.msra.mxu0 %v52
    %420 = vmatpush.msra.mxu0 %v51
    %421 = vmatpush.msra.mxu0 %v50
    %422 = vmatpush.msra.mxu0 %v49
    %423 = vmatpush.msra.mxu0 %v48
    %424 = vmatmul.f32.gmra.mxu0 %v385
    %v425 = vpop.f32.mrf.mxu0
    %v426 = vadd.f32 %v406, %v425
    %427 = vdwg.mxu0
    %428 = vmatpush.msra.mxu0 %v79
    %429 = vmatpush.msra.mxu0 %v78
    %430 = vmatpush.msra.mxu0 %v77
    %431 = vmatpush.msra.mxu0 %v76
    %432 = vmatpush.msra.mxu0 %v75
    %433 = vmatpush.msra.mxu0 %v74
    %434 = vmatpush.msra.mxu0 %v73
    %435 = vmatpush.msra.mxu0 %v72
    %436 = vmatpush.msra.mxu0 %v71
    %437 = vmatpush.msra.mxu0 %v70
    %438 = vmatpush.msra.mxu0 %v69
    %439 = vmatpush.msra.mxu0 %v68
    %440 = vmatpush.msra.mxu0 %v67
    %441 = vmatpush.msra.mxu0 %v66
    %442 = vmatpush.msra.mxu0 %v65
    %443 = vmatpush.msra.mxu0 %v64
    %444 = vmatmul.f32.gmra.mxu0 %v386
    %v445 = vpop.f32.mrf.mxu0
    %v446 = vadd.f32 %v426, %v445
    %447 = vdwg.mxu0
    %448 = vmatpush.msra.mxu0 %v95
    %449 = vmatpush.msra.mxu0 %v94
    %450 = vmatpush.msra.mxu0 %v93
    %451 = vmatpush.msra.mxu0 %v92
    %452 = vmatpush.msra.mxu0 %v91
    %453 = vmatpush.msra.mxu0 %v90
    %454 = vmatpush.msra.mxu0 %v89
    %455 = vmatpush.msra.mxu0 %v88
    %456 = vmatpush.msra.mxu0 %v87
    %457 = vmatpush.msra.mxu0 %v86
    %458 = vmatpush.msra.mxu0 %v85
    %459 = vmatpush.msra.mxu0 %v84
    %460 = vmatpush.msra.mxu0 %v83
    %461 = vmatpush.msra.mxu0 %v82
    %462 = vmatpush.msra.mxu0 %v81
    %463 = vmatpush.msra.mxu0 %v80
    %464 = vmatmul.f32.gmra.mxu0 %v387
    %v465 = vpop.f32.mrf.mxu0
    %v466 = vadd.f32 %v446, %v465
    %467 = vdwg.mxu0
    %v468 = vsub.f32 0.0, %v466
    %v469 = vmul.f32 %v468, 1.442695
    %v470 = vpow.pop %v469
    %v471 = vadd.f32 %v375, %v470
    %v472 = vrot.slane %v470, 3
    %v473 = vadd.f32 %v471, %v472
    %v474 = vrot.slane %v118, 4
    %v475 = vrot.slane %v138, 4
    %v476 = vrot.slane %v158, 4
    %v477 = vrot.slane %v178, 4
    %v478 = vsub.f32 %v118, %v474
    %v479 = vsub.f32 %v138, %v475
    %v480 = vsub.f32 %v158, %v476
    %v481 = vsub.f32 %v178, %v477
    %v482 = vand.u32 2147483647, %v478
    %v483 = vand.u32 2147483647, %v479
    %v484 = vand.u32 2147483647, %v480
    %v485 = vand.u32 2147483647, %v481
    %486 = vmatpush.msra.mxu0 %v47
    %487 = vmatpush.msra.mxu0 %v46
    %488 = vmatpush.msra.mxu0 %v45
    %489 = vmatpush.msra.mxu0 %v44
    %490 = vmatpush.msra.mxu0 %v43
    %491 = vmatpush.msra.mxu0 %v42
    %492 = vmatpush.msra.mxu0 %v41
    %493 = vmatpush.msra.mxu0 %v40
    %494 = vmatpush.msra.mxu0 %v39
    %495 = vmatpush.msra.mxu0 %v38
    %496 = vmatpush.msra.mxu0 %v37
    %497 = vmatpush.msra.mxu0 %v36
    %498 = vmatpush.msra.mxu0 %v35
    %499 = vmatpush.msra.mxu0 %v34
    %500 = vmatpush.msra.mxu0 %v33
    %501 = vmatpush.msra.mxu0 %v32
    %502 = vmatmul.f32.gmra.mxu0 %v482
    %v503 = vpop.f32.mrf.mxu0
    %v504 = vadd.f32 0.0, %v503
    %505 = vdwg.mxu0
    %506 = vmatpush.msra.mxu0 %v63
    %507 = vmatpush.msra.mxu0 %v62
    %508 = vmatpush.msra.mxu0 %v61
    %509 = vmatpush.msra.mxu0 %v60
    %510 = vmatpush.msra.mxu0 %v59
    %511 = vmatpush.msra.mxu0 %v58
    %512 = vmatpush.msra.mxu0 %v57
    %513 = vmatpush.msra.mxu0 %v56
    %514 = vmatpush.msra.mxu0 %v55
    %515 = vmatpush.msra.mxu0 %v54
    %516 = vmatpush.msra.mxu0 %v53
    %517 = vmatpush.msra.mxu0 %v52
    %518 = vmatpush.msra.mxu0 %v51
    %519 = vmatpush.msra.mxu0 %v50
    %520 = vmatpush.msra.mxu0 %v49
    %521 = vmatpush.msra.mxu0 %v48
    %522 = vmatmul.f32.gmra.mxu0 %v483
    %v523 = vpop.f32.mrf.mxu0
    %v524 = vadd.f32 %v504, %v523
    %525 = vdwg.mxu0
    %526 = vmatpush.msra.mxu0 %v79
    %527 = vmatpush.msra.mxu0 %v78
    %528 = vmatpush.msra.mxu0 %v77
    %529 = vmatpush.msra.mxu0 %v76
    %530 = vmatpush.msra.mxu0 %v75
    %531 = vmatpush.msra.mxu0 %v74
    %532 = vmatpush.msra.mxu0 %v73
    %533 = vmatpush.msra.mxu0 %v72
    %534 = vmatpush.msra.mxu0 %v71
    %535 = vmatpush.msra.mxu0 %v70
    %536 = vmatpush.msra.mxu0 %v69
    %537 = vmatpush.msra.mxu0 %v68
    %538 = vmatpush.msra.mxu0 %v67
    %539 = vmatpush.msra.mxu0 %v66
    %540 = vmatpush.msra.mxu0 %v65
    %541 = vmatpush.msra.mxu0 %v64
    %542 = vmatmul.f32.gmra.mxu0 %v484
    %v543 = vpop.f32.mrf.mxu0
    %v544 = vadd.f32 %v524, %v543
    %545 = vdwg.mxu0
    %546 = vmatpush.msra.mxu0 %v95
    %547 = vmatpush.msra.mxu0 %v94
    %548 = vmatpush.msra.mxu0 %v93
    %549 = vmatpush.msra.mxu0 %v92
    %550 = vmatpush.msra.mxu0 %v91
    %551 = vmatpush.msra.mxu0 %v90
    %552 = vmatpush.msra.mxu0 %v89
    %553 = vmatpush.msra.mxu0 %v88
    %554 = vmatpush.msra.mxu0 %v87
    %555 = vmatpush.msra.mxu0 %v86
    %556 = vmatpush.msra.mxu0 %v85
    %557 = vmatpush.msra.mxu0 %v84
    %558 = vmatpush.msra.mxu0 %v83
    %559 = vmatpush.msra.mxu0 %v82
    %560 = vmatpush.msra.mxu0 %v81
    %561 = vmatpush.msra.mxu0 %v80
    %562 = vmatmul.f32.gmra.mxu0 %v485
    %v563 = vpop.f32.mrf.mxu0
    %v564 = vadd.f32 %v544, %v563
    %565 = vdwg.mxu0
    %v566 = vsub.f32 0.0, %v564
    %v567 = vmul.f32 %v566, 1.442695
    %v568 = vpow.pop %v567
    %v569 = vadd.f32 %v473, %v568
    %vm570 = vcmask 64512
    %571 = vst.msk [vmem:[#allocation2] sm:$0xff] %vm570, %v569
    // Predicated region
    $region14: #{tpu_custom_call.1} parent=1 // pred_check
      _
    $region15: #{tpu_custom_call.1} parent=1 // pred_check_branch
      %573 = sbr.rel (0) target = $region17
    $region16: #{tpu_custom_call.1} parent=1 // pred_region
      %575 = vsyncadd [#allocation3], 0
      %s577 = sshll.u32 [#allocation2], 4
      %s578 = int_to_ptr.vmem [resolvable:$true] %s577
      %s579 = sshll.u32 %s3, 4
      %s580 = int_to_ptr.hbm [resolvable:$true] %s579
      %582 = dma.vmem_to_hbm [thread:$0]  %s578, 128, %s580, [#allocation3]
    $region17: #{tpu_custom_call.1} parent=1 // pred_fallthru
      _
    // Predicated region
    $region18: #{tpu_custom_call.1} parent=1 // pred_check
      _
    $region19: #{tpu_custom_call.1} parent=1 // pred_check_branch
      %584 = sbr.rel (0) target = $region21
    $region20: #{tpu_custom_call.1} parent=1 // pred_region
      %586 = dma.done [#allocation3], 128
    $region21: #{tpu_custom_call.1} parent=1 // pred_fallthru
      _
    %587 = vsyncpa [#allocation3], 1

</llo_original>
